<compile_context>
chip_gen: v5e
topology: v5e:2x2
jax: 0.10.0
libtpu: 0.0.40
codegen_flags: <defaults>
</compile_context>

<pallas_src>
import functools
import math

import jax
import jax.numpy as jnp
import numpy as np
from jax.experimental import pallas as pl
from jax.experimental.pallas import tpu as pltpu


# ----------------------------------------------------------------- tiling ---
def _round_up(n, m):
    return ((n + m - 1) // m) * m


def _hw_budgets():
    """(vmem_limit budget, per-block byte budget), generation-aware."""
    try:
        cap = int(pltpu.get_tpu_info().vmem_capacity_bytes)
    except Exception:  # pragma: no cover - fall back to a safe default
        cap = 128 << 20
    vmem_budget = min(64 << 20, int(cap * 0.7))          # ~45 MiB on v7x, 64 MiB on v5e/v6e
    max_tile_bytes = (4 << 20) if cap <= (64 << 20) else (8 << 20)
    return vmem_budget, max_tile_bytes


def _choose_tile(spatial, channels, itemsize, max_tile_bytes):
    """Lane width (multiple of 128) from the byte budget only; no divisibility
    requirement (cdiv grid + masked/partial tail handles the remainder)."""
    lanes_needed = _round_up(spatial, 128)
    budget_lanes = (max_tile_bytes // max(1, channels * itemsize)) // 128 * 128
    budget_lanes = max(budget_lanes, 512)                # keep >=512 lanes (HBM roofline)
    return min(budget_lanes, lanes_needed)


# ---------------------------------------------------------------- kernels ---
def _pool_kernel(x_ref, sum_ref, *, tile_s, tiles_per_split, spatial, needs_mask):
    # x_ref  : (1, C, tile_s) input dtype
    # sum_ref: (1, 1, C, 1)   f32 partial-sum accumulator (resident across t)
    p = pl.program_id(1)
    t = pl.program_id(2)

    @pl.when(t == 0)
    def _():
        sum_ref[...] = jnp.zeros_like(sum_ref)

    xv = x_ref[...].astype(jnp.float32)                  # (1, C, tile_s)
    if needs_mask:
        tile_idx = p * tiles_per_split + t               # logical (unclamped) tile
        col = tile_idx * tile_s + jax.lax.broadcasted_iota(jnp.int32, xv.shape, 2)
        xv = jnp.where(col < spatial, xv, 0.0)           # zero tail + duplicate tiles
    # sum over lanes; result keeps C on sublanes -> no relayout into sum_ref
    sum_ref[...] += jnp.sum(xv, axis=2, keepdims=True)[:, None, :, :]


def _scale_kernel(px_ref, pg_ref, wx_ref, bx_ref, wg_ref, bg_ref, out_ref):
    # Tiny (B,Fx)x(Fx,Fx) / (B,Fg)x(Fg,Fx) projections + sigmoid gate.
    att_x = jnp.dot(px_ref[...], wx_ref[...],
                    preferred_element_type=jnp.float32) + bx_ref[...]
    att_g = jnp.dot(pg_ref[...], wg_ref[...],
                    preferred_element_type=jnp.float32) + bg_ref[...]
    out_ref[...] = jax.nn.sigmoid((att_x + att_g) * 0.5)


def _apply_kernel(scale_ref, x_ref, out_ref):
    # HBM-bound element-wise path stays in the input dtype (no f32 upcast).
    sc = scale_ref[...].astype(x_ref.dtype)              # (1, C, 1)
    out_ref[...] = jnp.maximum(x_ref[...] * sc, 0)


# --------------------------------------------------------------- wrappers ---
def _global_avg_pool_sums(x3, *, tile_s, n_splits, vmem_budget):
    """Returns per-(batch, split) partial sums of shape (B, n_splits, C, 1) f32."""
    B, C, S = x3.shape
    n_blocks = pl.cdiv(S, tile_s)
    tps = pl.cdiv(n_blocks, n_splits)                    # tiles per split
    needs_mask = (n_splits * tps * tile_s != S)
    block_bytes = C * tile_s * x3.dtype.itemsize
    vmem_limit = int(min(vmem_budget, max(3 * block_bytes + (2 << 20), 8 << 20)))

    def x_map(b, p, t):
        # clamp so every DMA start stays in-bounds; duplicate reads are masked
        return (b, 0, jnp.minimum(p * tps + t, n_blocks - 1))

    return pl.pallas_call(
        functools.partial(_pool_kernel, tile_s=tile_s, tiles_per_split=tps,
                          spatial=S, needs_mask=needs_mask),
        out_shape=jax.ShapeDtypeStruct((B, n_splits, C, 1), jnp.float32),
        grid=(B, n_splits, tps),
        in_specs=[pl.BlockSpec((1, C, tile_s), x_map)],
        out_specs=pl.BlockSpec((1, 1, C, 1), lambda b, p, t: (b, p, 0, 0)),
        compiler_params=pltpu.CompilerParams(
            dimension_semantics=("parallel", "parallel", "arbitrary"),
            vmem_limit_bytes=vmem_limit),
        cost_estimate=pl.CostEstimate(
            flops=int(x3.size), transcendentals=0,
            bytes_accessed=int(x3.size * x3.dtype.itemsize + B * n_splits * C * 4)),
    )(x3)


def _channel_scale(pooled_x, pooled_g, wx, bx, wg, bg):
    B = pooled_x.shape[0]
    Fx = wx.shape[0]
    vspec = pl.BlockSpec(memory_space=pltpu.MemorySpace.VMEM)
    return pl.pallas_call(
        _scale_kernel,
        out_shape=jax.ShapeDtypeStruct((B, Fx), jnp.float32),
        in_specs=[vspec] * 6,
        out_specs=vspec,
    )(pooled_x, pooled_g,
      wx.T.astype(jnp.float32), bx.reshape(1, Fx).astype(jnp.float32),
      wg.T.astype(jnp.float32), bg.reshape(1, Fx).astype(jnp.float32))


def _apply_scale(x3, scale, *, tile_s, vmem_budget):
    B, C, S = x3.shape
    n_blocks = pl.cdiv(S, tile_s)
    scale3 = scale[:, :, None]                           # (B, C, 1) f32
    block_bytes = C * tile_s * x3.dtype.itemsize
    vmem_limit = int(min(vmem_budget, max(5 * block_bytes + (2 << 20), 8 << 20)))
    return pl.pallas_call(
        _apply_kernel,
        out_shape=jax.ShapeDtypeStruct((B, C, S), x3.dtype),
        grid=(B, n_blocks),
        in_specs=[pl.BlockSpec((1, C, 1), lambda b, t: (b, 0, 0)),
                  pl.BlockSpec((1, C, tile_s), lambda b, t: (b, 0, t))],
        out_specs=pl.BlockSpec((1, C, tile_s), lambda b, t: (b, 0, t)),
        compiler_params=pltpu.CompilerParams(
            dimension_semantics=("parallel", "parallel"),
            vmem_limit_bytes=vmem_limit),
        cost_estimate=pl.CostEstimate(
            flops=int(2 * x3.size), transcendentals=0,
            bytes_accessed=int(2 * x3.size * x3.dtype.itemsize + scale3.size * 4)),
    )(scale3, x3)


def cca_forward(g, x, wx, bx, wg, bg, *, max_tile_bytes=None):
    """g: (B, F_g, Hg, Wg), x: (B, F_x, H, W) -- NCHW like the PyTorch module."""
    B, Fx, H, W = x.shape
    _, Fg, Hg, Wg = g.shape
    sx, sg = H * W, Hg * Wg

    vmem_budget, default_tile_bytes = _hw_budgets()
    if max_tile_bytes is None:
        max_tile_bytes = default_tile_bytes

    tile_x = _choose_tile(sx, Fx, x.dtype.itemsize, max_tile_bytes)
    tile_g = _choose_tile(sg, Fg, g.dtype.itemsize, max_tile_bytes)

    x3 = x.reshape(B, Fx, sx)                            # free reshapes (contiguous)
    g3 = g.reshape(B, Fg, sg)

    n_splits_x = 2 if pl.cdiv(sx, tile_x) >= 2 else 1
    n_splits_g = 2 if pl.cdiv(sg, tile_g) >= 2 else 1

    sums_x = _global_avg_pool_sums(x3, tile_s=tile_x, n_splits=n_splits_x,
                                   vmem_budget=vmem_budget)
    sums_g = _global_avg_pool_sums(g3, tile_s=tile_g, n_splits=n_splits_g,
                                   vmem_budget=vmem_budget)

    # Tiny epilogue: fold split partial sums + 1/(H*W) (a few hundred bytes).
    pooled_x = jnp.sum(sums_x[..., 0], axis=1) * (1.0 / float(sx))   # (B, Fx) f32
    pooled_g = jnp.sum(sums_g[..., 0], axis=1) * (1.0 / float(sg))   # (B, Fg) f32

    scale = _channel_scale(pooled_x, pooled_g, wx, bx, wg, bg)        # (B, Fx) f32

    out3 = _apply_scale(x3, scale, tile_s=tile_x, vmem_budget=vmem_budget)
    return out3.reshape(B, Fx, H, W)


def cca_reference(g, x, wx, bx, wg, bg):
    """Pure-JAX reference mirroring the PyTorch forward."""
    pooled_x = jnp.mean(x.astype(jnp.float32), axis=(2, 3))
    pooled_g = jnp.mean(g.astype(jnp.float32), axis=(2, 3))
    att_x = pooled_x @ wx.T + bx
    att_g = pooled_g @ wg.T + bg
    scale = jax.nn.sigmoid((att_x + att_g) / 2.0)
    return jnp.maximum(x * scale[:, :, None, None].astype(x.dtype), 0)


if __name__ == "__main__":
    key = jax.random.PRNGKey(0)
    k_g, k_x, k_wx, k_bx, k_wg, k_bg = jax.random.split(key, 6)

    B, F_g, F_x = 2, 4, 4
    H, W = 16, 16          # spatial of x
    Hg, Wg = 8, 8          # spatial of g

    g = jax.random.normal(k_g, (B, F_g, Hg, Wg), dtype=jnp.float32)
    x = jax.random.normal(k_x, (B, F_x, H, W), dtype=jnp.float32)

    # nn.Linear-style init: U(-1/sqrt(fan_in), 1/sqrt(fan_in)).
    bnd_x = 1.0 / math.sqrt(F_x)
    bnd_g = 1.0 / math.sqrt(F_g)
    wx = jax.random.uniform(k_wx, (F_x, F_x), minval=-bnd_x, maxval=bnd_x, dtype=jnp.float32)
    bx = jax.random.uniform(k_bx, (F_x,), minval=-bnd_x, maxval=bnd_x, dtype=jnp.float32)
    wg = jax.random.uniform(k_wg, (F_x, F_g), minval=-bnd_g, maxval=bnd_g, dtype=jnp.float32)
    bg = jax.random.uniform(k_bg, (F_x,), minval=-bnd_g, maxval=bnd_g, dtype=jnp.float32)

    fwd = jax.jit(cca_forward)
    out = jax.block_until_ready(fwd(g, x, wx, bx, wg, bg))

    ref = cca_reference(g, x, wx, bx, wg, bg)
    np.testing.assert_allclose(np.asarray(out), np.asarray(ref), rtol=1e-5, atol=1e-5)

    print("KERNEL_OK")
</pallas_src>

<mosaic_0001>
module attributes {stable_mosaic.version = 11 : i64} {
  func.func @_pool_kernel(%arg0: i32, %arg1: i32, %arg2: i32, %arg3: memref<1x4x128xf32, #tpu.memory_space<vmem>>, %arg4: memref<1x1x4x1xf32, #tpu.memory_space<vmem>>) attributes {dimension_semantics = [#tpu.dimension_semantics<parallel>, #tpu.dimension_semantics<parallel>, #tpu.dimension_semantics<arbitrary>], iteration_bounds = array<i64: 2, 1, 1>, scalar_prefetch = 0 : i64, scratch_operands = 0 : i64, tpu.core_type = #tpu.core_type<tc>, window_params = [{transform_indices = @transform_0, window_bounds = array<i64: 1, 4, 128>}, {transform_indices = @transform_1, window_bounds = array<i64: 1, 1, 4, 1>}]} {
    %c0_i32 = arith.constant 0 : i32
    %0 = arith.cmpi eq, %arg2, %c0_i32 : i32
    %1 = arith.extui %0 : i1 to i32
    %c0_i32_0 = arith.constant 0 : i32
    %2 = arith.cmpi ne, %1, %c0_i32_0 : i32
    scf.if %2 {
      %cst_12 = arith.constant 0.000000e+00 : f32
      %20 = vector.broadcast %cst_12 : f32 to vector<1x1x4x1xf32>
      %c0_13 = arith.constant 0 : index
      %c0_14 = arith.constant 0 : index
      %c0_15 = arith.constant 0 : index
      %c0_16 = arith.constant 0 : index
      %21 = vector.load %arg4[%c0_13, %c0_14, %c0_15, %c0_16] : memref<1x1x4x1xf32, #tpu.memory_space<vmem>>, vector<1x1x4x1xf32>
      tpu.vector_store %arg4[%c0_13, %c0_14, %c0_15, %c0_16], %20 {strides = array<i32>} : memref<1x1x4x1xf32, #tpu.memory_space<vmem>>, vector<1x1x4x1xf32>,
    } else {
    }
    %c0 = arith.constant 0 : index
    %c0_1 = arith.constant 0 : index
    %c0_2 = arith.constant 0 : index
    %3 = vector.load %arg3[%c0, %c0_1, %c0_2] : memref<1x4x128xf32, #tpu.memory_space<vmem>>, vector<1x4x128xf32>
    %c1_i32 = arith.constant 1 : i32
    %4 = arith.muli %arg1, %c1_i32 : i32
    %5 = arith.addi %4, %arg2 : i32
    %c128_i32 = arith.constant 128 : i32
    %6 = arith.muli %5, %c128_i32 : i32
    %7 = tpu.iota {dimensions = array<i32: 2>} : vector<1x4x128xi32>
    %8 = vector.broadcast %6 : i32 to vector<1x4x128xi32>
    %9 = arith.addi %8, %7 : vector<1x4x128xi32>
    %c64_i32 = arith.constant 64 : i32
    %10 = vector.broadcast %c64_i32 : i32 to vector<1x4x128xi32>
    %11 = arith.cmpi slt, %9, %10 : vector<1x4x128xi32>
    %cst = arith.constant 0.000000e+00 : f32
    %12 = vector.broadcast %cst : f32 to vector<1x4x128xf32>
    %13 = arith.select %11, %3, %12 : vector<1x4x128xi1>, vector<1x4x128xf32>
    %c0_3 = arith.constant 0 : index
    %c0_4 = arith.constant 0 : index
    %c0_5 = arith.constant 0 : index
    %c0_6 = arith.constant 0 : index
    %14 = vector.load %arg4[%c0_3, %c0_4, %c0_5, %c0_6] : memref<1x1x4x1xf32, #tpu.memory_space<vmem>>, vector<1x1x4x1xf32>
    %cst_7 = arith.constant dense<0.000000e+00> : vector<1x4xf32>
    %15 = vector.multi_reduction <add>, %13, %cst_7 [2] : vector<1x4x128xf32> to vector<1x4xf32>
    %16 = vector.shape_cast %15 : vector<1x4xf32> to vector<1x4x1xf32>
    %17 = vector.shape_cast %16 : vector<1x4x1xf32> to vector<1x1x4x1xf32>
    %18 = arith.addf %14, %17 : vector<1x1x4x1xf32>
    %c0_8 = arith.constant 0 : index
    %c0_9 = arith.constant 0 : index
    %c0_10 = arith.constant 0 : index
    %c0_11 = arith.constant 0 : index
    %19 = vector.load %arg4[%c0_8, %c0_9, %c0_10, %c0_11] : memref<1x1x4x1xf32, #tpu.memory_space<vmem>>, vector<1x1x4x1xf32>
    tpu.vector_store %arg4[%c0_8, %c0_9, %c0_10, %c0_11], %18 {strides = array<i32>} : memref<1x1x4x1xf32, #tpu.memory_space<vmem>>, vector<1x1x4x1xf32>,
    return
  }
  func.func @transform_0(%arg0: i32, %arg1: i32, %arg2: i32) -> (i32, i32, i32) {
    %c1_i32 = arith.constant 1 : i32
    %0 = arith.muli %arg1, %c1_i32 : i32
    %1 = arith.addi %0, %arg2 : i32
    %c0_i32 = arith.constant 0 : i32
    %2 = arith.minsi %1, %c0_i32 : i32
    %c0_i32_0 = arith.constant 0 : i32
    %c0_i32_1 = arith.constant 0 : i32
    return %arg0, %c0_i32_0, %2 : i32, i32, i32
  }
  func.func @transform_1(%arg0: i32, %arg1: i32, %arg2: i32) -> (i32, i32, i32, i32) {
    %c0_i32 = arith.constant 0 : i32
    %c0_i32_0 = arith.constant 0 : i32
    %c0_i32_1 = arith.constant 0 : i32
    return %arg0, %arg1, %c0_i32, %c0_i32_0 : i32, i32, i32, i32
  }
}

module attributes {stable_mosaic.version = 11 : i64} {
  func.func @_pool_kernel(%arg0: i32, %arg1: i32, %arg2: i32, %arg3: memref<1x4x256xf32, #tpu.memory_space<vmem>>, %arg4: memref<1x1x4x1xf32, #tpu.memory_space<vmem>>) attributes {dimension_semantics = [#tpu.dimension_semantics<parallel>, #tpu.dimension_semantics<parallel>, #tpu.dimension_semantics<arbitrary>], iteration_bounds = array<i64: 2, 1, 1>, scalar_prefetch = 0 : i64, scratch_operands = 0 : i64, tpu.core_type = #tpu.core_type<tc>, window_params = [{transform_indices = @transform_0, window_bounds = array<i64: 1, 4, 256>}, {transform_indices = @transform_1, window_bounds = array<i64: 1, 1, 4, 1>}]} {
    %c0_i32 = arith.constant 0 : i32
    %0 = arith.cmpi eq, %arg2, %c0_i32 : i32
    %1 = arith.extui %0 : i1 to i32
    %c0_i32_0 = arith.constant 0 : i32
    %2 = arith.cmpi ne, %1, %c0_i32_0 : i32
    scf.if %2 {
      %cst_11 = arith.constant 0.000000e+00 : f32
      %10 = vector.broadcast %cst_11 : f32 to vector<1x1x4x1xf32>
      %c0_12 = arith.constant 0 : index
      %c0_13 = arith.constant 0 : index
      %c0_14 = arith.constant 0 : index
      %c0_15 = arith.constant 0 : index
      %11 = vector.load %arg4[%c0_12, %c0_13, %c0_14, %c0_15] : memref<1x1x4x1xf32, #tpu.memory_space<vmem>>, vector<1x1x4x1xf32>
      tpu.vector_store %arg4[%c0_12, %c0_13, %c0_14, %c0_15], %10 {strides = array<i32>} : memref<1x1x4x1xf32, #tpu.memory_space<vmem>>, vector<1x1x4x1xf32>,
    } else {
    }
    %c0 = arith.constant 0 : index
    %c0_1 = arith.constant 0 : index
    %c0_2 = arith.constant 0 : index
    %3 = vector.load %arg3[%c0, %c0_1, %c0_2] : memref<1x4x256xf32, #tpu.memory_space<vmem>>, vector<1x4x256xf32>
    %c0_3 = arith.constant 0 : index
    %c0_4 = arith.constant 0 : index
    %c0_5 = arith.constant 0 : index
    %c0_6 = arith.constant 0 : index
    %4 = vector.load %arg4[%c0_3, %c0_4, %c0_5, %c0_6] : memref<1x1x4x1xf32, #tpu.memory_space<vmem>>, vector<1x1x4x1xf32>
    %cst = arith.constant dense<0.000000e+00> : vector<1x4xf32>
    %5 = vector.multi_reduction <add>, %3, %cst [2] : vector<1x4x256xf32> to vector<1x4xf32>
    %6 = vector.shape_cast %5 : vector<1x4xf32> to vector<1x4x1xf32>
    %7 = vector.shape_cast %6 : vector<1x4x1xf32> to vector<1x1x4x1xf32>
    %8 = arith.addf %4, %7 : vector<1x1x4x1xf32>
    %c0_7 = arith.constant 0 : index
    %c0_8 = arith.constant 0 : index
    %c0_9 = arith.constant 0 : index
    %c0_10 = arith.constant 0 : index
    %9 = vector.load %arg4[%c0_7, %c0_8, %c0_9, %c0_10] : memref<1x1x4x1xf32, #tpu.memory_space<vmem>>, vector<1x1x4x1xf32>
    tpu.vector_store %arg4[%c0_7, %c0_8, %c0_9, %c0_10], %8 {strides = array<i32>} : memref<1x1x4x1xf32, #tpu.memory_space<vmem>>, vector<1x1x4x1xf32>,
    return
  }
  func.func @transform_0(%arg0: i32, %arg1: i32, %arg2: i32) -> (i32, i32, i32) {
    %c1_i32 = arith.constant 1 : i32
    %0 = arith.muli %arg1, %c1_i32 : i32
    %1 = arith.addi %0, %arg2 : i32
    %c0_i32 = arith.constant 0 : i32
    %2 = arith.minsi %1, %c0_i32 : i32
    %c0_i32_0 = arith.constant 0 : i32
    %c0_i32_1 = arith.constant 0 : i32
    return %arg0, %c0_i32_0, %2 : i32, i32, i32
  }
  func.func @transform_1(%arg0: i32, %arg1: i32, %arg2: i32) -> (i32, i32, i32, i32) {
    %c0_i32 = arith.constant 0 : i32
    %c0_i32_0 = arith.constant 0 : i32
    %c0_i32_1 = arith.constant 0 : i32
    return %arg0, %arg1, %c0_i32, %c0_i32_0 : i32, i32, i32, i32
  }
}

module attributes {stable_mosaic.version = 11 : i64} {
  func.func @_apply_kernel(%arg0: i32, %arg1: i32, %arg2: memref<1x4x1xf32, #tpu.memory_space<vmem>>, %arg3: memref<1x4x256xf32, #tpu.memory_space<vmem>>, %arg4: memref<1x4x256xf32, #tpu.memory_space<vmem>>) attributes {dimension_semantics = [#tpu.dimension_semantics<parallel>, #tpu.dimension_semantics<parallel>], iteration_bounds = array<i64: 2, 1>, scalar_prefetch = 0 : i64, scratch_operands = 0 : i64, tpu.core_type = #tpu.core_type<tc>, window_params = [{transform_indices = @transform_0, window_bounds = array<i64: 1, 4, 1>}, {transform_indices = @transform_1, window_bounds = array<i64: 1, 4, 256>}, {transform_indices = @transform_2, window_bounds = array<i64: 1, 4, 256>}]} {
    %c0 = arith.constant 0 : index
    %c0_0 = arith.constant 0 : index
    %c0_1 = arith.constant 0 : index
    %0 = vector.load %arg2[%c0, %c0_0, %c0_1] : memref<1x4x1xf32, #tpu.memory_space<vmem>>, vector<1x4x1xf32>
    %c0_2 = arith.constant 0 : index
    %c0_3 = arith.constant 0 : index
    %c0_4 = arith.constant 0 : index
    %1 = vector.load %arg3[%c0_2, %c0_3, %c0_4] : memref<1x4x256xf32, #tpu.memory_space<vmem>>, vector<1x4x256xf32>
    %2 = vector.broadcast %0 : vector<1x4x1xf32> to vector<1x4x256xf32>
    %3 = arith.mulf %1, %2 : vector<1x4x256xf32>
    %cst = arith.constant 0.000000e+00 : f32
    %4 = vector.broadcast %cst : f32 to vector<1x4x256xf32>
    %5 = arith.maximumf %3, %4 : vector<1x4x256xf32>
    %c0_5 = arith.constant 0 : index
    %c0_6 = arith.constant 0 : index
    %c0_7 = arith.constant 0 : index
    %6 = vector.load %arg4[%c0_5, %c0_6, %c0_7] : memref<1x4x256xf32, #tpu.memory_space<vmem>>, vector<1x4x256xf32>
    tpu.vector_store %arg4[%c0_5, %c0_6, %c0_7], %5 {strides = array<i32>} : memref<1x4x256xf32, #tpu.memory_space<vmem>>, vector<1x4x256xf32>,
    return
  }
  func.func @transform_0(%arg0: i32, %arg1: i32) -> (i32, i32, i32) {
    %c0_i32 = arith.constant 0 : i32
    %c0_i32_0 = arith.constant 0 : i32
    %c0_i32_1 = arith.constant 0 : i32
    return %arg0, %c0_i32, %c0_i32_0 : i32, i32, i32
  }
  func.func @transform_1(%arg0: i32, %arg1: i32) -> (i32, i32, i32) {
    %c0_i32 = arith.constant 0 : i32
    %c0_i32_0 = arith.constant 0 : i32
    return %arg0, %c0_i32, %arg1 : i32, i32, i32
  }
  func.func @transform_2(%arg0: i32, %arg1: i32) -> (i32, i32, i32) {
    %c0_i32 = arith.constant 0 : i32
    %c0_i32_0 = arith.constant 0 : i32
    return %arg0, %c0_i32, %arg1 : i32, i32, i32
  }
}

module attributes {stable_mosaic.version = 11 : i64} {
  func.func @_scale_kernel(%arg0: memref<2x4xf32, #tpu.memory_space<vmem>>, %arg1: memref<2x4xf32, #tpu.memory_space<vmem>>, %arg2: memref<4x4xf32, #tpu.memory_space<vmem>>, %arg3: memref<1x4xf32, #tpu.memory_space<vmem>>, %arg4: memref<4x4xf32, #tpu.memory_space<vmem>>, %arg5: memref<1x4xf32, #tpu.memory_space<vmem>>, %arg6: memref<2x4xf32, #tpu.memory_space<vmem>>) attributes {dimension_semantics = [], scalar_prefetch = 0 : i64, scratch_operands = 0 : i64, tpu.core_type = #tpu.core_type<tc>} {
    %c0 = arith.constant 0 : index
    %c0_0 = arith.constant 0 : index
    %0 = vector.load %arg0[%c0, %c0_0] : memref<2x4xf32, #tpu.memory_space<vmem>>, vector<2x4xf32>
    %c0_1 = arith.constant 0 : index
    %c0_2 = arith.constant 0 : index
    %1 = vector.load %arg2[%c0_1, %c0_2] : memref<4x4xf32, #tpu.memory_space<vmem>>, vector<4x4xf32>
    %cst = arith.constant dense<0.000000e+00> : vector<2x4xf32>
    %2 = tpu.matmul %0, %1, %cst {dimension_numbers = #tpu.dot_dimension_numbers<[1], [0], [0], [1], [0, 0, 1, 1], [], []>} : vector<2x4xf32>, vector<4x4xf32>, vector<2x4xf32> -> vector<2x4xf32>
    %c0_3 = arith.constant 0 : index
    %c0_4 = arith.constant 0 : index
    %3 = vector.load %arg3[%c0_3, %c0_4] : memref<1x4xf32, #tpu.memory_space<vmem>>, vector<1x4xf32>
    %4 = vector.broadcast %3 : vector<1x4xf32> to vector<2x4xf32>
    %5 = arith.addf %2, %4 : vector<2x4xf32>
    %c0_5 = arith.constant 0 : index
    %c0_6 = arith.constant 0 : index
    %6 = vector.load %arg1[%c0_5, %c0_6] : memref<2x4xf32, #tpu.memory_space<vmem>>, vector<2x4xf32>
    %c0_7 = arith.constant 0 : index
    %c0_8 = arith.constant 0 : index
    %7 = vector.load %arg4[%c0_7, %c0_8] : memref<4x4xf32, #tpu.memory_space<vmem>>, vector<4x4xf32>
    %cst_9 = arith.constant dense<0.000000e+00> : vector<2x4xf32>
    %8 = tpu.matmul %6, %7, %cst_9 {dimension_numbers = #tpu.dot_dimension_numbers<[1], [0], [0], [1], [0, 0, 1, 1], [], []>} : vector<2x4xf32>, vector<4x4xf32>, vector<2x4xf32> -> vector<2x4xf32>
    %c0_10 = arith.constant 0 : index
    %c0_11 = arith.constant 0 : index
    %9 = vector.load %arg5[%c0_10, %c0_11] : memref<1x4xf32, #tpu.memory_space<vmem>>, vector<1x4xf32>
    %10 = vector.broadcast %9 : vector<1x4xf32> to vector<2x4xf32>
    %11 = arith.addf %8, %10 : vector<2x4xf32>
    %12 = arith.addf %5, %11 : vector<2x4xf32>
    %cst_12 = arith.constant 5.000000e-01 : f32
    %13 = vector.broadcast %cst_12 : f32 to vector<2x4xf32>
    %14 = arith.mulf %12, %13 : vector<2x4xf32>
    %15 = arith.negf %14 : vector<2x4xf32>
    %16 = math.exp %15 : vector<2x4xf32>
    %cst_13 = arith.constant 1.000000e+00 : f32
    %17 = vector.broadcast %cst_13 : f32 to vector<2x4xf32>
    %18 = arith.addf %17, %16 : vector<2x4xf32>
    %19 = arith.divf %17, %18 : vector<2x4xf32>
    %c0_14 = arith.constant 0 : index
    %c0_15 = arith.constant 0 : index
    %20 = vector.load %arg6[%c0_14, %c0_15] : memref<2x4xf32, #tpu.memory_space<vmem>>, vector<2x4xf32>
    tpu.vector_store %arg6[%c0_14, %c0_15], %19 {strides = array<i32>} : memref<2x4xf32, #tpu.memory_space<vmem>>, vector<2x4xf32>,
    return
  }
}

</mosaic_0001>

<llo_original>
// kernel: cca_forward.5
$region0: #{cca_forward.5}
  #allocation0 [shape = 'u32[]', space=smem, size = 0x4, offset = 0x4, fixed_abs, tag = 'smem constant byte address 0x4 - core index']
  #allocation1 [shape = 'u32[72,128]{1,0:T(1,128)}', space=vmem, size = 0x9000, scoped, tag = 'internal scratch']
  %s0 = inlined_call_operand.vmem [shape: f32[2,4,64], index: 0, kind: input, shape index: {}]
  %s1 = inlined_call_operand.vmem [shape: f32[2,1,4,1], index: 1, kind: output, shape index: {}]
  %s2 = sld [smem:[#allocation0]]
  $region41: #{cca_forward.5} parent=0
    _
  %s4 = ssub.s32 1, %s2
  %s5 = scalar_select 0, %s4, %s2
  loop: start=0, step=1, limit=4
  $region2: #{cca_forward.5} parent=0 // loop_pre_header
    _
  $region3: #{cca_forward.5} parent=0 // loop_header
    %s7 = sphi 0, %s11
    %p8 = scmp.ge.s32.totalorder %s7, 4
    %s14 = sphi 0, %s33
    %s15 = sphi 0, %s29
    %s16 = sphi 0, %s25
    %s17 = sphi 0, %s14
    %s18 = sphi 0, %s15
    %s19 = sphi 0, %s16
    %s20 = sphi 0, %s17
    %s21 = sphi 0, %s18
    %s22 = sphi 0, %s19
    %s44 = sphi 0, %s46
    %s47 = sphi 0, %s44
    %s48 = sphi 0, %s47
    %s64 = sphi 0, %s48
    %s72 = sphi 0, %s74
    %s75 = sphi 0, %s72
    %s76 = sphi 0, %s75
    %s92 = sphi 0, %s76
  $region4: #{cca_forward.5} parent=0 // loop_header_branch
    %10 = sbr.rel (%p8) target = $region8
  $region5: #{cca_forward.5} parent=0 // loop_body
    %s12 = ssub.s32 %s7, 1
    %s13 = ssub.s32 %s7, 2
    %s23 = sadd.s32 1, %s16
    %p24 = scmp.ge.s32.totalorder %s23, 1
    %s25 = scalar_select %p24, 0, %s23
    %s26 = sadd.s32 1, %s15
    %s27 = scalar_select %p24, %s26, %s15
    %p28 = scmp.ge.s32.totalorder %s27, 1
    %s29 = scalar_select %p28, 0, %s27
    %s30 = sadd.s32 1, %s14
    %s31 = scalar_select %p28, %s30, %s14
    %p32 = scmp.ge.s32.totalorder %s31, 2
    %s33 = scalar_select %p32, 0, %s31
    %s34 = sadd.s32 %s15, %s16
    %p35 = scmp.lt.s32.totalorder %s34, 0
    %s36 = scalar_select %p35, %s34, 0
    %s37 = sadd.s32 %s29, %s25
    %p38 = scmp.lt.s32.totalorder %s37, 0
    %s39 = scalar_select %p38, %s37, 0
    %s40 = ssub.s32 %s14, %s33
    %s41 = ssub.s32 %s36, %s39
    %s42 = sor.u32 %s40, %s41
    %p43 = scmp.eq.s32.totalorder %s42, 0
    %s45 = sadd.s32 %s44, 1
    %s46 = scalar_select %p43, %s44, %s45
    %p49 = pneg %p43
    %p50 = scmp.eq.s32.totalorder %s7, 1
    %p51 = por %p49, %p50
    %p52 = scmp.ne.s32.totalorder %s44, %s47
    %p53 = scmp.eq.s32.totalorder %s7, 0
    %p54 = por %p52, %p53
    %p55 = scmp.ne.s32.totalorder %s44, %s47
    %p56 = scmp.eq.s32.totalorder %s12, 1
    %p57 = por %p55, %p56
    %p58 = scmp.ne.s32.totalorder %s47, %s48
    %p59 = scmp.eq.s32.totalorder %s12, 0
    %p60 = por %p58, %p59
    %p61 = scmp.ne.s32.totalorder %s47, %s48
    %p62 = scmp.eq.s32.totalorder %s13, 1
    %p63 = por %p61, %p62
    %p65 = scmp.ne.s32.totalorder %s48, %s64
    %p66 = scmp.eq.s32.totalorder %s13, 0
    %p67 = por %p65, %p66
    %s68 = ssub.s32 %s14, %s33
    %s69 = ssub.s32 %s15, %s29
    %s70 = sor.u32 %s68, %s69
    %p71 = scmp.eq.s32.totalorder %s70, 0
    %s73 = sadd.s32 %s72, 1
    %s74 = scalar_select %p71, %s72, %s73
    %p77 = pneg %p71
    %p78 = scmp.eq.s32.totalorder %s7, 1
    %p79 = por %p77, %p78
    %p80 = scmp.ne.s32.totalorder %s72, %s75
    %p81 = scmp.eq.s32.totalorder %s7, 0
    %p82 = por %p80, %p81
    %p83 = scmp.ne.s32.totalorder %s72, %s75
    %p84 = scmp.eq.s32.totalorder %s12, 1
    %p85 = por %p83, %p84
    %p86 = scmp.ne.s32.totalorder %s75, %s76
    %p87 = scmp.eq.s32.totalorder %s12, 0
    %p88 = por %p86, %p87
    %p89 = scmp.ne.s32.totalorder %s75, %s76
    %p90 = scmp.eq.s32.totalorder %s13, 1
    %p91 = por %p89, %p90
    %p93 = scmp.ne.s32.totalorder %s76, %s92
    %p94 = scmp.eq.s32.totalorder %s13, 0
    %p95 = por %p93, %p94
    %p96 = scmp.le.s32.totalorder 1, %s7
    %p97 = scmp.lt.s32.totalorder %s7, 3
    %p98 = pnand %p96, %p97
    %p99 = pneg %p98
    // Predicated region
    $region9: #{cca_forward.5} parent=5 // pred_check
      _
    $region10: #{cca_forward.5} parent=5 // pred_check_branch
      %101 = sbr.rel (%p98) target = $region12
    $region11: #{cca_forward.5} parent=5 // pred_region
      %s102 = ssub.s32 %s7, 1
    $region12: #{cca_forward.5} parent=5 // pred_fallthru
      _
    %p103 = scmp.lt.s32.totalorder %s7, 2
    // Predicated region
    $region13: #{cca_forward.5} parent=5 // pred_check
      %p104 = pneg %p103
    $region14: #{cca_forward.5} parent=5 // pred_check_branch
      %106 = sbr.rel (%p104) target = $region16
    $region15: #{cca_forward.5} parent=5 // pred_region
      // Predicated region
      $region17: #{cca_forward.5} parent=15 // pred_check
        %p107 = pneg %p54
      $region18: #{cca_forward.5} parent=15 // pred_check_branch
        %109 = sbr.rel (%p107) target = $region20
      $region19: #{cca_forward.5} parent=15 // pred_region
        %s110 = sadd.s32 %s15, %s16
        %p111 = scmp.lt.s32.totalorder %s110, 0
        %s112 = scalar_select %p111, %s110, 0
        %p113 = scmp.lt.s32.totalorder %s14, 1
        %s114 = scalar_select %p113, %s14, 1
        %p115 = scmp.lt.s32.totalorder %s112, 0
        %s116 = scalar_select %p115, %s112, 0
        %s117 = sadd.s32 %s116, %s114
        %s118 = smul.addr %s117, 4
        %s119 = scalar_lea.vmem %s0, %s118
        %s120 = sadd.s32 %s15, %s16
        %p121 = scmp.lt.s32.totalorder %s120, 0
        %s122 = scalar_select %p121, %s120, 0
      $region20: #{cca_forward.5} parent=15 // pred_fallthru
        _
    $region16: #{cca_forward.5} parent=5 // pred_fallthru
      _
    %p123 = scmp.le.s32.totalorder 1, %s7
    %p124 = scmp.lt.s32.totalorder %s7, 3
    %p125 = pnand %p123, %p124
    %p126 = pneg %p125
    // Predicated region
    $region21: #{cca_forward.5} parent=5 // pred_check
      _
    $region22: #{cca_forward.5} parent=5 // pred_check_branch
      %128 = sbr.rel (%p125) target = $region24
    $region23: #{cca_forward.5} parent=5 // pred_region
      %s129 = ssub.s32 %s7, 1
      %s130 = sadd.s32 %s18, %s19
      %p131 = scmp.lt.s32.totalorder %s130, 0
      %s132 = scalar_select %p131, %s130, 0
      %p133 = scmp.lt.s32.totalorder %s17, 1
      %s134 = scalar_select %p133, %s17, 1
      %p135 = scmp.lt.s32.totalorder %s132, 0
      %s136 = scalar_select %p135, %s132, 0
      %s137 = sadd.s32 %s136, %s134
      %s138 = smul.addr %s137, 4
      %s139 = scalar_lea.vmem %s0, %s138
      %p140 = pneg %p60
      %p141 = pneg %p57
      %p142 = pneg %p88
      %p143 = pneg %p85
      %p144 = scmp.lt.s32.totalorder %s17, 1
      %s145 = scalar_select %p144, %s17, 1
      %p146 = scmp.lt.s32.totalorder %s18, 0
      %s147 = scalar_select %p146, %s18, 0
      %s148 = sadd.s32 %s147, %s145
      %s149 = smul.addr %s148, 4
      %s150 = scalar_lea.vmem %s1, %s149
      %s151 = sadd.s32 %s18, %s19
      %p152 = scmp.lt.s32.totalorder %s151, 0
      %s153 = scalar_select %p152, %s151, 0
      %p154 = scmp.lt.s32.totalorder %s17, 1
      %s155 = scalar_select %p154, %s17, 1
      %p156 = scmp.lt.s32.totalorder %s153, 0
      %s157 = scalar_select %p156, %s153, 0
      %s158 = sadd.s32 %s157, %s155
      %s159 = smul.addr %s158, 4
      %s160 = scalar_lea.vmem %s0, %s159
      %s161 = sadd.s32 %s18, %s19
      %p162 = scmp.lt.s32.totalorder %s161, 0
      %s163 = scalar_select %p162, %s161, 0
      %p164 = scmp.lt.s32.totalorder %s17, 1
      %s165 = scalar_select %p164, %s17, 1
      %p166 = scmp.lt.s32.totalorder %s18, 0
      %s167 = scalar_select %p166, %s18, 0
      %s168 = sadd.s32 %s167, %s165
      %s169 = smul.addr %s168, 4
      %s170 = scalar_lea.vmem %s1, %s169
      %p171 = scmp.eq.s32.totalorder %s19, 0
      // Predicated region
      $region25: #{cca_forward.5} parent=23 // pred_check
        %p172 = pneg %p171
      $region26: #{cca_forward.5} parent=23 // pred_check_branch
        %174 = sbr.rel (%p172) target = $region28
      $region27: #{cca_forward.5} parent=23 // pred_region
        %vm175 = vcmask 3072
        %176 = vst.msk [vmem:[%s170] sm:$0xf] %vm175, 0.0
      $region28: #{cca_forward.5} parent=23 // pred_fallthru
        _
      %v177 = vld [vmem:[%s160] sm:$0xf]
      %s178 = sadd.s32 %s18, %s19
      %s179 = smul.u32 %s178, 128
      %v180 = vlaneseq
      %v181 = vand.u32 %v180, 127
      %v182 = vstv %s179
      %v183 = vadd.s32 %v182, %v181
      %vm184 = vcmp.lt.s32.totalorder %v183, 64
      %v185 = vsel %vm184, %v177, 0.0
      %v186 = vld [vmem:[%s170] sm:$0xf]
      %vm187 = vcmask 1043456
      %v188 = vsel %vm187, %v185, 0.0
      %189 = vadd.xlane.f32.xlu0 %v188
      %v190 = vpop.xlane.xlu0 %189
      %v191 = vadd.f32 %v186, %v190
      %vm192 = vcmask 3072
      %193 = vst.msk [vmem:[%s170] sm:$0xf] %vm192, %v191
      %p194 = scmp.lt.s32.totalorder %s17, 1
      %s195 = scalar_select %p194, %s17, 1
      %p196 = scmp.lt.s32.totalorder %s18, 0
      %s197 = scalar_select %p196, %s18, 0
      %s198 = sadd.s32 %s197, %s195
      %s199 = smul.addr %s198, 4
      %s200 = scalar_lea.vmem %s1, %s199
      // Predicated region
      $region29: #{cca_forward.5} parent=23 // pred_check
        %p201 = pneg %p85
      $region30: #{cca_forward.5} parent=23 // pred_check_branch
        %203 = sbr.rel (%p201) target = $region32
      $region31: #{cca_forward.5} parent=23 // pred_region
        _
      $region32: #{cca_forward.5} parent=23 // pred_fallthru
        _
    $region24: #{cca_forward.5} parent=5 // pred_fallthru
      _
    %p204 = scmp.le.s32.totalorder 2, %s7
    // Predicated region
    $region33: #{cca_forward.5} parent=5 // pred_check
      %p205 = pneg %p204
    $region34: #{cca_forward.5} parent=5 // pred_check_branch
      %207 = sbr.rel (%p205) target = $region36
    $region35: #{cca_forward.5} parent=5 // pred_region
      %s208 = ssub.s32 %s7, 2
      // Predicated region
      $region37: #{cca_forward.5} parent=35 // pred_check
        %p209 = pneg %p91
      $region38: #{cca_forward.5} parent=35 // pred_check_branch
        %211 = sbr.rel (%p209) target = $region40
      $region39: #{cca_forward.5} parent=35 // pred_region
        %p212 = scmp.lt.s32.totalorder %s20, 1
        %s213 = scalar_select %p212, %s20, 1
        %p214 = scmp.lt.s32.totalorder %s21, 0
        %s215 = scalar_select %p214, %s21, 0
        %s216 = sadd.s32 %s215, %s213
        %s217 = smul.addr %s216, 4
        %s218 = scalar_lea.vmem %s1, %s217
      $region40: #{cca_forward.5} parent=35 // pred_fallthru
        _
    $region36: #{cca_forward.5} parent=5 // pred_fallthru
      _
  $region6: #{cca_forward.5} parent=0 // loop_footer
    %s11 = sadd.s32 1, %s7
  $region7: #{cca_forward.5} parent=0 // loop_footer_branch
    %6 = sbr.rel target = $region3
  $region8: #{cca_forward.5} parent=0 // loop_exit
    _

// kernel: cca_forward.4
$region0: #{cca_forward.4}
  #allocation0 [shape = 'u32[]', space=smem, size = 0x4, offset = 0x4, fixed_abs, tag = 'smem constant byte address 0x4 - core index']
  #allocation1 [shape = 'u32[72,128]{1,0:T(1,128)}', space=vmem, size = 0x9000, scoped, tag = 'internal scratch']
  %s0 = inlined_call_operand.vmem [shape: f32[2,4,256], index: 0, kind: input, shape index: {}]
  %s1 = inlined_call_operand.vmem [shape: f32[2,1,4,1], index: 1, kind: output, shape index: {}]
  %s2 = sld [smem:[#allocation0]]
  $region41: #{cca_forward.4} parent=0
    _
  %s4 = ssub.s32 1, %s2
  %s5 = scalar_select 0, %s4, %s2
  loop: start=0, step=1, limit=4
  $region2: #{cca_forward.4} parent=0 // loop_pre_header
    _
  $region3: #{cca_forward.4} parent=0 // loop_header
    %s7 = sphi 0, %s11
    %p8 = scmp.ge.s32.totalorder %s7, 4
    %s14 = sphi 0, %s33
    %s15 = sphi 0, %s29
    %s16 = sphi 0, %s25
    %s17 = sphi 0, %s14
    %s18 = sphi 0, %s15
    %s19 = sphi 0, %s16
    %s20 = sphi 0, %s17
    %s21 = sphi 0, %s18
    %s22 = sphi 0, %s19
    %s44 = sphi 0, %s46
    %s47 = sphi 0, %s44
    %s48 = sphi 0, %s47
    %s64 = sphi 0, %s48
    %s72 = sphi 0, %s74
    %s75 = sphi 0, %s72
    %s76 = sphi 0, %s75
    %s92 = sphi 0, %s76
  $region4: #{cca_forward.4} parent=0 // loop_header_branch
    %10 = sbr.rel (%p8) target = $region8
  $region5: #{cca_forward.4} parent=0 // loop_body
    %s12 = ssub.s32 %s7, 1
    %s13 = ssub.s32 %s7, 2
    %s23 = sadd.s32 1, %s16
    %p24 = scmp.ge.s32.totalorder %s23, 1
    %s25 = scalar_select %p24, 0, %s23
    %s26 = sadd.s32 1, %s15
    %s27 = scalar_select %p24, %s26, %s15
    %p28 = scmp.ge.s32.totalorder %s27, 1
    %s29 = scalar_select %p28, 0, %s27
    %s30 = sadd.s32 1, %s14
    %s31 = scalar_select %p28, %s30, %s14
    %p32 = scmp.ge.s32.totalorder %s31, 2
    %s33 = scalar_select %p32, 0, %s31
    %s34 = sadd.s32 %s15, %s16
    %p35 = scmp.lt.s32.totalorder %s34, 0
    %s36 = scalar_select %p35, %s34, 0
    %s37 = sadd.s32 %s29, %s25
    %p38 = scmp.lt.s32.totalorder %s37, 0
    %s39 = scalar_select %p38, %s37, 0
    %s40 = ssub.s32 %s14, %s33
    %s41 = ssub.s32 %s36, %s39
    %s42 = sor.u32 %s40, %s41
    %p43 = scmp.eq.s32.totalorder %s42, 0
    %s45 = sadd.s32 %s44, 1
    %s46 = scalar_select %p43, %s44, %s45
    %p49 = pneg %p43
    %p50 = scmp.eq.s32.totalorder %s7, 1
    %p51 = por %p49, %p50
    %p52 = scmp.ne.s32.totalorder %s44, %s47
    %p53 = scmp.eq.s32.totalorder %s7, 0
    %p54 = por %p52, %p53
    %p55 = scmp.ne.s32.totalorder %s44, %s47
    %p56 = scmp.eq.s32.totalorder %s12, 1
    %p57 = por %p55, %p56
    %p58 = scmp.ne.s32.totalorder %s47, %s48
    %p59 = scmp.eq.s32.totalorder %s12, 0
    %p60 = por %p58, %p59
    %p61 = scmp.ne.s32.totalorder %s47, %s48
    %p62 = scmp.eq.s32.totalorder %s13, 1
    %p63 = por %p61, %p62
    %p65 = scmp.ne.s32.totalorder %s48, %s64
    %p66 = scmp.eq.s32.totalorder %s13, 0
    %p67 = por %p65, %p66
    %s68 = ssub.s32 %s14, %s33
    %s69 = ssub.s32 %s15, %s29
    %s70 = sor.u32 %s68, %s69
    %p71 = scmp.eq.s32.totalorder %s70, 0
    %s73 = sadd.s32 %s72, 1
    %s74 = scalar_select %p71, %s72, %s73
    %p77 = pneg %p71
    %p78 = scmp.eq.s32.totalorder %s7, 1
    %p79 = por %p77, %p78
    %p80 = scmp.ne.s32.totalorder %s72, %s75
    %p81 = scmp.eq.s32.totalorder %s7, 0
    %p82 = por %p80, %p81
    %p83 = scmp.ne.s32.totalorder %s72, %s75
    %p84 = scmp.eq.s32.totalorder %s12, 1
    %p85 = por %p83, %p84
    %p86 = scmp.ne.s32.totalorder %s75, %s76
    %p87 = scmp.eq.s32.totalorder %s12, 0
    %p88 = por %p86, %p87
    %p89 = scmp.ne.s32.totalorder %s75, %s76
    %p90 = scmp.eq.s32.totalorder %s13, 1
    %p91 = por %p89, %p90
    %p93 = scmp.ne.s32.totalorder %s76, %s92
    %p94 = scmp.eq.s32.totalorder %s13, 0
    %p95 = por %p93, %p94
    %p96 = scmp.le.s32.totalorder 1, %s7
    %p97 = scmp.lt.s32.totalorder %s7, 3
    %p98 = pnand %p96, %p97
    %p99 = pneg %p98
    // Predicated region
    $region9: #{cca_forward.4} parent=5 // pred_check
      _
    $region10: #{cca_forward.4} parent=5 // pred_check_branch
      %101 = sbr.rel (%p98) target = $region12
    $region11: #{cca_forward.4} parent=5 // pred_region
      %s102 = ssub.s32 %s7, 1
    $region12: #{cca_forward.4} parent=5 // pred_fallthru
      _
    %p103 = scmp.lt.s32.totalorder %s7, 2
    // Predicated region
    $region13: #{cca_forward.4} parent=5 // pred_check
      %p104 = pneg %p103
    $region14: #{cca_forward.4} parent=5 // pred_check_branch
      %106 = sbr.rel (%p104) target = $region16
    $region15: #{cca_forward.4} parent=5 // pred_region
      // Predicated region
      $region17: #{cca_forward.4} parent=15 // pred_check
        %p107 = pneg %p54
      $region18: #{cca_forward.4} parent=15 // pred_check_branch
        %109 = sbr.rel (%p107) target = $region20
      $region19: #{cca_forward.4} parent=15 // pred_region
        %s110 = sadd.s32 %s15, %s16
        %p111 = scmp.lt.s32.totalorder %s110, 0
        %s112 = scalar_select %p111, %s110, 0
        %s113 = smul.u32 2, %s112
        %p114 = scmp.lt.s32.totalorder %s14, 1
        %s115 = scalar_select %p114, %s14, 1
        %p116 = scmp.lt.s32.totalorder %s113, 1
        %s117 = scalar_select %p116, %s113, 1
        %s118 = smul.addr %s115, 2
        %s119 = sadd.s32 %s117, %s118
        %s120 = smul.addr %s119, 4
        %s121 = scalar_lea.vmem %s0, %s120
        %s122 = sadd.s32 %s15, %s16
        %p123 = scmp.lt.s32.totalorder %s122, 0
        %s124 = scalar_select %p123, %s122, 0
        %s125 = smul.u32 2, %s124
      $region20: #{cca_forward.4} parent=15 // pred_fallthru
        _
    $region16: #{cca_forward.4} parent=5 // pred_fallthru
      _
    %p126 = scmp.le.s32.totalorder 1, %s7
    %p127 = scmp.lt.s32.totalorder %s7, 3
    %p128 = pnand %p126, %p127
    %p129 = pneg %p128
    // Predicated region
    $region21: #{cca_forward.4} parent=5 // pred_check
      _
    $region22: #{cca_forward.4} parent=5 // pred_check_branch
      %131 = sbr.rel (%p128) target = $region24
    $region23: #{cca_forward.4} parent=5 // pred_region
      %s132 = ssub.s32 %s7, 1
      %s133 = sadd.s32 %s18, %s19
      %p134 = scmp.lt.s32.totalorder %s133, 0
      %s135 = scalar_select %p134, %s133, 0
      %s136 = smul.u32 2, %s135
      %p137 = scmp.lt.s32.totalorder %s17, 1
      %s138 = scalar_select %p137, %s17, 1
      %p139 = scmp.lt.s32.totalorder %s136, 1
      %s140 = scalar_select %p139, %s136, 1
      %s141 = smul.addr %s138, 2
      %s142 = sadd.s32 %s140, %s141
      %s143 = smul.addr %s142, 4
      %s144 = scalar_lea.vmem %s0, %s143
      %p145 = pneg %p60
      %p146 = pneg %p57
      %p147 = pneg %p88
      %p148 = pneg %p85
      %p149 = scmp.lt.s32.totalorder %s17, 1
      %s150 = scalar_select %p149, %s17, 1
      %p151 = scmp.lt.s32.totalorder %s18, 0
      %s152 = scalar_select %p151, %s18, 0
      %s153 = sadd.s32 %s152, %s150
      %s154 = smul.addr %s153, 4
      %s155 = scalar_lea.vmem %s1, %s154
      %s156 = sadd.s32 %s18, %s19
      %p157 = scmp.lt.s32.totalorder %s156, 0
      %s158 = scalar_select %p157, %s156, 0
      %s159 = smul.u32 2, %s158
      %p160 = scmp.lt.s32.totalorder %s17, 1
      %s161 = scalar_select %p160, %s17, 1
      %p162 = scmp.lt.s32.totalorder %s159, 1
      %s163 = scalar_select %p162, %s159, 1
      %s164 = smul.addr %s161, 2
      %s165 = sadd.s32 %s163, %s164
      %s166 = smul.addr %s165, 4
      %s167 = scalar_lea.vmem %s0, %s166
      %s168 = sadd.s32 %s18, %s19
      %p169 = scmp.lt.s32.totalorder %s168, 0
      %s170 = scalar_select %p169, %s168, 0
      %s171 = smul.u32 2, %s170
      %p172 = scmp.lt.s32.totalorder %s17, 1
      %s173 = scalar_select %p172, %s17, 1
      %p174 = scmp.lt.s32.totalorder %s18, 0
      %s175 = scalar_select %p174, %s18, 0
      %s176 = sadd.s32 %s175, %s173
      %s177 = smul.addr %s176, 4
      %s178 = scalar_lea.vmem %s1, %s177
      %p179 = scmp.eq.s32.totalorder %s19, 0
      // Predicated region
      $region25: #{cca_forward.4} parent=23 // pred_check
        %p180 = pneg %p179
      $region26: #{cca_forward.4} parent=23 // pred_check_branch
        %182 = sbr.rel (%p180) target = $region28
      $region27: #{cca_forward.4} parent=23 // pred_region
        %vm183 = vcmask 3072
        %184 = vst.msk [vmem:[%s178] sm:$0xf] %vm183, 0.0
      $region28: #{cca_forward.4} parent=23 // pred_fallthru
        _
      %v185 = vld [vmem:[%s167] sm:$0xff]
      %v186 = vld [vmem:[%s178] sm:$0xf]
      %188 = vst [vmem:[#allocation1] ss:$2 sm:$0xff] %v185
      %v189 = vld.sshfl [vmem:[#allocation1] sm:$0xff pattern:$0x75316420]
      %v190 = vld.sshfl [vmem:[#allocation1 + $0x8] sm:$0xff pattern:$0x75316420]
      %vm193 = vcmask 1043456
      %v194 = vsel %vm193, %v189, 0.0
      %v195 = vsel %vm193, %v190, 0.0
      %v196 = vadd.f32 %v194, %v195
      %197 = vadd.xlane.f32.xlu0 %v196
      %v198 = vpop.xlane.xlu0 %197
      %v199 = vadd.f32 %v186, %v198
      %vm200 = vcmask 3072
      %201 = vst.msk [vmem:[%s178] sm:$0xf] %vm200, %v199
      %p202 = scmp.lt.s32.totalorder %s17, 1
      %s203 = scalar_select %p202, %s17, 1
      %p204 = scmp.lt.s32.totalorder %s18, 0
      %s205 = scalar_select %p204, %s18, 0
      %s206 = sadd.s32 %s205, %s203
      %s207 = smul.addr %s206, 4
      %s208 = scalar_lea.vmem %s1, %s207
      // Predicated region
      $region29: #{cca_forward.4} parent=23 // pred_check
        %p209 = pneg %p85
      $region30: #{cca_forward.4} parent=23 // pred_check_branch
        %211 = sbr.rel (%p209) target = $region32
      $region31: #{cca_forward.4} parent=23 // pred_region
        _
      $region32: #{cca_forward.4} parent=23 // pred_fallthru
        _
    $region24: #{cca_forward.4} parent=5 // pred_fallthru
      _
    %p212 = scmp.le.s32.totalorder 2, %s7
    // Predicated region
    $region33: #{cca_forward.4} parent=5 // pred_check
      %p213 = pneg %p212
    $region34: #{cca_forward.4} parent=5 // pred_check_branch
      %215 = sbr.rel (%p213) target = $region36
    $region35: #{cca_forward.4} parent=5 // pred_region
      %s216 = ssub.s32 %s7, 2
      // Predicated region
      $region37: #{cca_forward.4} parent=35 // pred_check
        %p217 = pneg %p91
      $region38: #{cca_forward.4} parent=35 // pred_check_branch
        %219 = sbr.rel (%p217) target = $region40
      $region39: #{cca_forward.4} parent=35 // pred_region
        %p220 = scmp.lt.s32.totalorder %s20, 1
        %s221 = scalar_select %p220, %s20, 1
        %p222 = scmp.lt.s32.totalorder %s21, 0
        %s223 = scalar_select %p222, %s21, 0
        %s224 = sadd.s32 %s223, %s221
        %s225 = smul.addr %s224, 4
        %s226 = scalar_lea.vmem %s1, %s225
      $region40: #{cca_forward.4} parent=35 // pred_fallthru
        _
    $region36: #{cca_forward.4} parent=5 // pred_fallthru
      _
  $region6: #{cca_forward.4} parent=0 // loop_footer
    %s11 = sadd.s32 1, %s7
  $region7: #{cca_forward.4} parent=0 // loop_footer_branch
    %6 = sbr.rel target = $region3
  $region8: #{cca_forward.4} parent=0 // loop_exit
    _

// kernel: cca_forward.7
$region0: #{cca_forward.7}
  #allocation0 [shape = 'u32[]', space=smem, size = 0x4, offset = 0x4, fixed_abs, tag = 'smem constant byte address 0x4 - core index']
  #allocation1 [shape = 'u32[72,128]{1,0:T(1,128)}', space=vmem, size = 0x9000, scoped, tag = 'internal scratch']
  %s0 = inlined_call_operand.vmem [shape: f32[2,4,1], index: 0, kind: input, shape index: {}]
  %s1 = inlined_call_operand.vmem [shape: f32[2,4,256], index: 1, kind: input, shape index: {}]
  %s2 = inlined_call_operand.vmem [shape: f32[2,4,256], index: 2, kind: output, shape index: {}]
  %s3 = sld [smem:[#allocation0]]
  $region41: #{cca_forward.7} parent=0
    _
  %s5 = ssub.s32 1, %s3
  %s6 = scalar_select 0, %s5, %s3
  loop: start=0, step=1, limit=4
  $region2: #{cca_forward.7} parent=0 // loop_pre_header
    _
  $region3: #{cca_forward.7} parent=0 // loop_header
    %s8 = sphi 0, %s12
    %p9 = scmp.ge.s32.totalorder %s8, 4
    %s15 = sphi 0, %s27
    %s16 = sphi 0, %s23
    %s17 = sphi 0, %s15
    %s18 = sphi 0, %s16
    %s19 = sphi 0, %s17
    %s20 = sphi 0, %s18
    %s30 = sphi 0, %s32
    %s33 = sphi 0, %s30
    %s34 = sphi 0, %s33
    %s50 = sphi 0, %s34
    %s58 = sphi 0, %s60
    %s61 = sphi 0, %s58
    %s62 = sphi 0, %s61
    %s78 = sphi 0, %s62
    %s86 = sphi 0, %s88
    %s89 = sphi 0, %s86
    %s90 = sphi 0, %s89
    %s106 = sphi 0, %s90
  $region4: #{cca_forward.7} parent=0 // loop_header_branch
    %11 = sbr.rel (%p9) target = $region8
  $region5: #{cca_forward.7} parent=0 // loop_body
    %s13 = ssub.s32 %s8, 1
    %s14 = ssub.s32 %s8, 2
    %s21 = sadd.s32 1, %s16
    %p22 = scmp.ge.s32.totalorder %s21, 1
    %s23 = scalar_select %p22, 0, %s21
    %s24 = sadd.s32 1, %s15
    %s25 = scalar_select %p22, %s24, %s15
    %p26 = scmp.ge.s32.totalorder %s25, 2
    %s27 = scalar_select %p26, 0, %s25
    %s28 = ssub.s32 %s15, %s27
    %p29 = scmp.eq.s32.totalorder %s28, 0
    %s31 = sadd.s32 %s30, 1
    %s32 = scalar_select %p29, %s30, %s31
    %p35 = pneg %p29
    %p36 = scmp.eq.s32.totalorder %s8, 1
    %p37 = por %p35, %p36
    %p38 = scmp.ne.s32.totalorder %s30, %s33
    %p39 = scmp.eq.s32.totalorder %s8, 0
    %p40 = por %p38, %p39
    %p41 = scmp.ne.s32.totalorder %s30, %s33
    %p42 = scmp.eq.s32.totalorder %s13, 1
    %p43 = por %p41, %p42
    %p44 = scmp.ne.s32.totalorder %s33, %s34
    %p45 = scmp.eq.s32.totalorder %s13, 0
    %p46 = por %p44, %p45
    %p47 = scmp.ne.s32.totalorder %s33, %s34
    %p48 = scmp.eq.s32.totalorder %s14, 1
    %p49 = por %p47, %p48
    %p51 = scmp.ne.s32.totalorder %s34, %s50
    %p52 = scmp.eq.s32.totalorder %s14, 0
    %p53 = por %p51, %p52
    %s54 = ssub.s32 %s15, %s27
    %s55 = ssub.s32 %s16, %s23
    %s56 = sor.u32 %s54, %s55
    %p57 = scmp.eq.s32.totalorder %s56, 0
    %s59 = sadd.s32 %s58, 1
    %s60 = scalar_select %p57, %s58, %s59
    %p63 = pneg %p57
    %p64 = scmp.eq.s32.totalorder %s8, 1
    %p65 = por %p63, %p64
    %p66 = scmp.ne.s32.totalorder %s58, %s61
    %p67 = scmp.eq.s32.totalorder %s8, 0
    %p68 = por %p66, %p67
    %p69 = scmp.ne.s32.totalorder %s58, %s61
    %p70 = scmp.eq.s32.totalorder %s13, 1
    %p71 = por %p69, %p70
    %p72 = scmp.ne.s32.totalorder %s61, %s62
    %p73 = scmp.eq.s32.totalorder %s13, 0
    %p74 = por %p72, %p73
    %p75 = scmp.ne.s32.totalorder %s61, %s62
    %p76 = scmp.eq.s32.totalorder %s14, 1
    %p77 = por %p75, %p76
    %p79 = scmp.ne.s32.totalorder %s62, %s78
    %p80 = scmp.eq.s32.totalorder %s14, 0
    %p81 = por %p79, %p80
    %s82 = ssub.s32 %s15, %s27
    %s83 = ssub.s32 %s16, %s23
    %s84 = sor.u32 %s82, %s83
    %p85 = scmp.eq.s32.totalorder %s84, 0
    %s87 = sadd.s32 %s86, 1
    %s88 = scalar_select %p85, %s86, %s87
    %p91 = pneg %p85
    %p92 = scmp.eq.s32.totalorder %s8, 1
    %p93 = por %p91, %p92
    %p94 = scmp.ne.s32.totalorder %s86, %s89
    %p95 = scmp.eq.s32.totalorder %s8, 0
    %p96 = por %p94, %p95
    %p97 = scmp.ne.s32.totalorder %s86, %s89
    %p98 = scmp.eq.s32.totalorder %s13, 1
    %p99 = por %p97, %p98
    %p100 = scmp.ne.s32.totalorder %s89, %s90
    %p101 = scmp.eq.s32.totalorder %s13, 0
    %p102 = por %p100, %p101
    %p103 = scmp.ne.s32.totalorder %s89, %s90
    %p104 = scmp.eq.s32.totalorder %s14, 1
    %p105 = por %p103, %p104
    %p107 = scmp.ne.s32.totalorder %s90, %s106
    %p108 = scmp.eq.s32.totalorder %s14, 0
    %p109 = por %p107, %p108
    %p110 = scmp.le.s32.totalorder 1, %s8
    %p111 = scmp.lt.s32.totalorder %s8, 3
    %p112 = pnand %p110, %p111
    %p113 = pneg %p112
    // Predicated region
    $region9: #{cca_forward.7} parent=5 // pred_check
      _
    $region10: #{cca_forward.7} parent=5 // pred_check_branch
      %115 = sbr.rel (%p112) target = $region12
    $region11: #{cca_forward.7} parent=5 // pred_region
      %s116 = ssub.s32 %s8, 1
    $region12: #{cca_forward.7} parent=5 // pred_fallthru
      _
    %p117 = scmp.lt.s32.totalorder %s8, 2
    // Predicated region
    $region13: #{cca_forward.7} parent=5 // pred_check
      %p118 = pneg %p117
    $region14: #{cca_forward.7} parent=5 // pred_check_branch
      %120 = sbr.rel (%p118) target = $region16
    $region15: #{cca_forward.7} parent=5 // pred_region
      // Predicated region
      $region17: #{cca_forward.7} parent=15 // pred_check
        %p121 = pneg %p40
      $region18: #{cca_forward.7} parent=15 // pred_check_branch
        %123 = sbr.rel (%p121) target = $region20
      $region19: #{cca_forward.7} parent=15 // pred_region
        %p124 = scmp.lt.s32.totalorder %s15, 1
        %s125 = scalar_select %p124, %s15, 1
        %s126 = smul.addr %s125, 4
        %s127 = scalar_lea.vmem %s0, %s126
      $region20: #{cca_forward.7} parent=15 // pred_fallthru
        _
      // Predicated region
      $region21: #{cca_forward.7} parent=15 // pred_check
        %p128 = pneg %p68
      $region22: #{cca_forward.7} parent=15 // pred_check_branch
        %130 = sbr.rel (%p128) target = $region24
      $region23: #{cca_forward.7} parent=15 // pred_region
        %s131 = smul.u32 2, %s16
        %p132 = scmp.lt.s32.totalorder %s15, 1
        %s133 = scalar_select %p132, %s15, 1
        %p134 = scmp.lt.s32.totalorder %s131, 1
        %s135 = scalar_select %p134, %s131, 1
        %s136 = smul.addr %s133, 2
        %s137 = sadd.s32 %s135, %s136
        %s138 = smul.addr %s137, 4
        %s139 = scalar_lea.vmem %s1, %s138
        %s140 = smul.u32 2, %s16
      $region24: #{cca_forward.7} parent=15 // pred_fallthru
        _
    $region16: #{cca_forward.7} parent=5 // pred_fallthru
      _
    %p141 = scmp.le.s32.totalorder 1, %s8
    %p142 = scmp.lt.s32.totalorder %s8, 3
    %p143 = pnand %p141, %p142
    %p144 = pneg %p143
    // Predicated region
    $region25: #{cca_forward.7} parent=5 // pred_check
      _
    $region26: #{cca_forward.7} parent=5 // pred_check_branch
      %146 = sbr.rel (%p143) target = $region28
    $region27: #{cca_forward.7} parent=5 // pred_region
      %s147 = ssub.s32 %s8, 1
      %p148 = scmp.lt.s32.totalorder %s17, 1
      %s149 = scalar_select %p148, %s17, 1
      %s150 = smul.addr %s149, 4
      %s151 = scalar_lea.vmem %s0, %s150
      %p152 = pneg %p46
      %p153 = pneg %p43
      %s154 = smul.u32 2, %s18
      %p155 = scmp.lt.s32.totalorder %s17, 1
      %s156 = scalar_select %p155, %s17, 1
      %p157 = scmp.lt.s32.totalorder %s154, 1
      %s158 = scalar_select %p157, %s154, 1
      %s159 = smul.addr %s156, 2
      %s160 = sadd.s32 %s158, %s159
      %s161 = smul.addr %s160, 4
      %s162 = scalar_lea.vmem %s1, %s161
      %p163 = pneg %p74
      %p164 = pneg %p71
      %p165 = pneg %p102
      %p166 = pneg %p99
      %s167 = smul.u32 2, %s18
      %p168 = scmp.lt.s32.totalorder %s17, 1
      %s169 = scalar_select %p168, %s17, 1
      %p170 = scmp.lt.s32.totalorder %s167, 1
      %s171 = scalar_select %p170, %s167, 1
      %s172 = smul.addr %s169, 2
      %s173 = sadd.s32 %s171, %s172
      %s174 = smul.addr %s173, 4
      %s175 = scalar_lea.vmem %s2, %s174
      %p176 = scmp.lt.s32.totalorder %s17, 1
      %s177 = scalar_select %p176, %s17, 1
      %s178 = smul.addr %s177, 4
      %s179 = scalar_lea.vmem %s0, %s178
      %s180 = smul.u32 2, %s18
      %p181 = scmp.lt.s32.totalorder %s17, 1
      %s182 = scalar_select %p181, %s17, 1
      %p183 = scmp.lt.s32.totalorder %s180, 1
      %s184 = scalar_select %p183, %s180, 1
      %s185 = smul.addr %s182, 2
      %s186 = sadd.s32 %s184, %s185
      %s187 = smul.addr %s186, 4
      %s188 = scalar_lea.vmem %s1, %s187
      %s189 = smul.u32 2, %s18
      %s190 = smul.u32 2, %s18
      %p191 = scmp.lt.s32.totalorder %s17, 1
      %s192 = scalar_select %p191, %s17, 1
      %p193 = scmp.lt.s32.totalorder %s190, 1
      %s194 = scalar_select %p193, %s190, 1
      %s195 = smul.addr %s192, 2
      %s196 = sadd.s32 %s194, %s195
      %s197 = smul.addr %s196, 4
      %s198 = scalar_lea.vmem %s2, %s197
      %s199 = smul.u32 2, %s18
      %v200 = vld [vmem:[%s179] sm:$0xf]
      %v201 = vld [vmem:[%s188] sm:$0xff]
      %203 = vset.pattern.permute.xlu0 0
      %204 = vperm.xlu0 %203, %v200
      %v205 = vpop.permute.xlu0 %204
      %v207 = vunpack.c.l.s4 839922192
      %v208 = vunpack.c.0.s8 %v207
      %v209 = vperm.slane %v205, %v208
      %v211 = vmul.f32 %v201, %v209
      %v212 = vmax.f32 %v211, 0.0
      %213 = vst [vmem:[%s198] sm:$0xff] %v212
      %s214 = smul.u32 2, %s18
      %p215 = scmp.lt.s32.totalorder %s17, 1
      %s216 = scalar_select %p215, %s17, 1
      %p217 = scmp.lt.s32.totalorder %s214, 1
      %s218 = scalar_select %p217, %s214, 1
      %s219 = smul.addr %s216, 2
      %s220 = sadd.s32 %s218, %s219
      %s221 = smul.addr %s220, 4
      %s222 = scalar_lea.vmem %s2, %s221
      // Predicated region
      $region29: #{cca_forward.7} parent=27 // pred_check
        %p223 = pneg %p99
      $region30: #{cca_forward.7} parent=27 // pred_check_branch
        %225 = sbr.rel (%p223) target = $region32
      $region31: #{cca_forward.7} parent=27 // pred_region
        %s226 = smul.u32 2, %s18
      $region32: #{cca_forward.7} parent=27 // pred_fallthru
        _
    $region28: #{cca_forward.7} parent=5 // pred_fallthru
      _
    %p227 = scmp.le.s32.totalorder 2, %s8
    // Predicated region
    $region33: #{cca_forward.7} parent=5 // pred_check
      %p228 = pneg %p227
    $region34: #{cca_forward.7} parent=5 // pred_check_branch
      %230 = sbr.rel (%p228) target = $region36
    $region35: #{cca_forward.7} parent=5 // pred_region
      %s231 = ssub.s32 %s8, 2
      // Predicated region
      $region37: #{cca_forward.7} parent=35 // pred_check
        %p232 = pneg %p105
      $region38: #{cca_forward.7} parent=35 // pred_check_branch
        %234 = sbr.rel (%p232) target = $region40
      $region39: #{cca_forward.7} parent=35 // pred_region
        %s235 = smul.u32 2, %s20
        %p236 = scmp.lt.s32.totalorder %s19, 1
        %s237 = scalar_select %p236, %s19, 1
        %p238 = scmp.lt.s32.totalorder %s235, 1
        %s239 = scalar_select %p238, %s235, 1
        %s240 = smul.addr %s237, 2
        %s241 = sadd.s32 %s239, %s240
        %s242 = smul.addr %s241, 4
        %s243 = scalar_lea.vmem %s2, %s242
      $region40: #{cca_forward.7} parent=35 // pred_fallthru
        _
    $region36: #{cca_forward.7} parent=5 // pred_fallthru
      _
  $region6: #{cca_forward.7} parent=0 // loop_footer
    %s12 = sadd.s32 1, %s8
  $region7: #{cca_forward.7} parent=0 // loop_footer_branch
    %7 = sbr.rel target = $region3
  $region8: #{cca_forward.7} parent=0 // loop_exit
    _

// kernel: cca_forward.6
$region0: #{cca_forward.6}
  #allocation0 [shape = 'u32[]', space=smem, size = 0x4, offset = 0x4, fixed_abs, tag = 'smem constant byte address 0x4 - core index']
  #allocation1 [shape = 'u32[72,128]{1,0:T(1,128)}', space=vmem, size = 0x9000, scoped, tag = 'internal scratch']
  %s0 = inlined_call_operand.vmem [shape: f32[2,4], index: 0, kind: input, shape index: {}]
  %s1 = inlined_call_operand.vmem [shape: f32[2,4], index: 1, kind: input, shape index: {}]
  %s2 = inlined_call_operand.vmem [shape: f32[4,4], index: 2, kind: input, shape index: {}]
  %s3 = inlined_call_operand.vmem [shape: f32[1,4], index: 3, kind: input, shape index: {}]
  %s4 = inlined_call_operand.vmem [shape: f32[4,4], index: 4, kind: input, shape index: {}]
  %s5 = inlined_call_operand.vmem [shape: f32[1,4], index: 5, kind: input, shape index: {}]
  %s6 = inlined_call_operand.vmem [shape: f32[2,4], index: 6, kind: output, shape index: {}]
  %s7 = sld [smem:[#allocation0]]
  $region34: #{cca_forward.6} parent=0
    _
  %s9 = ssub.s32 1, %s7
  %s10 = scalar_select 0, %s9, %s7
  // Predicated region
  $region2: #{cca_forward.6} parent=0 // pred_check
    _
  $region3: #{cca_forward.6} parent=0 // pred_check_branch
    %12 = sbr.rel (0) target = $region5
  $region4: #{cca_forward.6} parent=0 // pred_region
    _
  $region5: #{cca_forward.6} parent=0 // pred_fallthru
    _
  // Predicated region
  $region6: #{cca_forward.6} parent=0 // pred_check
    _
  $region7: #{cca_forward.6} parent=0 // pred_check_branch
    %14 = sbr.rel (0) target = $region9
  $region8: #{cca_forward.6} parent=0 // pred_region
    _
  $region9: #{cca_forward.6} parent=0 // pred_fallthru
    _
  // Predicated region
  $region10: #{cca_forward.6} parent=0 // pred_check
    _
  $region11: #{cca_forward.6} parent=0 // pred_check_branch
    %16 = sbr.rel (0) target = $region13
  $region12: #{cca_forward.6} parent=0 // pred_region
    _
  $region13: #{cca_forward.6} parent=0 // pred_fallthru
    _
  // Predicated region
  $region14: #{cca_forward.6} parent=0 // pred_check
    _
  $region15: #{cca_forward.6} parent=0 // pred_check_branch
    %18 = sbr.rel (0) target = $region17
  $region16: #{cca_forward.6} parent=0 // pred_region
    _
  $region17: #{cca_forward.6} parent=0 // pred_fallthru
    _
  // Predicated region
  $region18: #{cca_forward.6} parent=0 // pred_check
    _
  $region19: #{cca_forward.6} parent=0 // pred_check_branch
    %20 = sbr.rel (0) target = $region21
  $region20: #{cca_forward.6} parent=0 // pred_region
    _
  $region21: #{cca_forward.6} parent=0 // pred_fallthru
    _
  // Predicated region
  $region22: #{cca_forward.6} parent=0 // pred_check
    _
  $region23: #{cca_forward.6} parent=0 // pred_check_branch
    %22 = sbr.rel (0) target = $region25
  $region24: #{cca_forward.6} parent=0 // pred_region
    _
  $region25: #{cca_forward.6} parent=0 // pred_fallthru
    _
  %v23 = vld [vmem:[%s0] sm:$0x3]
  %v24 = vld [vmem:[%s2] sm:$0xf]
  %v25 = vld [vmem:[%s3] sm:$0x1]
  %v27 = vperm.slane %v25, 0
  %vm29 = vcmask 31744
  %v31 = vsel %vm29, %v23, 0
  %vm33 = vcmask 1043456
  %v35 = vsel %vm33, %v24, 0
  %37 = vmatpush.msra.mxu0 0.0
  %38 = vmatpush.msra.mxu0 0.0
  %39 = vmatpush.msra.mxu0 0.0
  %40 = vmatpush.msra.mxu0 0.0
  %41 = vmatpush.msra.mxu0 0.0
  %42 = vmatpush.msra.mxu0 0.0
  %43 = vmatpush.msra.mxu0 0.0
  %44 = vmatpush.msra.mxu0 0.0
  %45 = vmatpush.msra.mxu0 0.0
  %46 = vmatpush.msra.mxu0 0.0
  %47 = vmatpush.msra.mxu0 0.0
  %48 = vmatpush.msra.mxu0 0.0
  %49 = vmatpush.msra.mxu0 0.0
  %50 = vmatpush.msra.mxu0 0.0
  %51 = vmatpush.msra.mxu0 0.0
  %52 = vmatpush.msra.mxu0 %v35
  %53 = vmatmul.f32.gmra.mxu0 %v31
  %v54 = vpop.f32.mrf.mxu0
  %v55 = vadd.f32 %v27, %v54
  %56 = vdwg.mxu0
  %v57 = vld [vmem:[%s1] sm:$0x3]
  %v58 = vld [vmem:[%s4] sm:$0xf]
  %v59 = vld [vmem:[%s5] sm:$0x1]
  %v61 = vperm.slane %v59, 0
  %v64 = vsel %vm29, %v57, 0
  %v67 = vsel %vm33, %v58, 0
  %69 = vmatpush.msra.mxu0 0.0
  %70 = vmatpush.msra.mxu0 0.0
  %71 = vmatpush.msra.mxu0 0.0
  %72 = vmatpush.msra.mxu0 0.0
  %73 = vmatpush.msra.mxu0 0.0
  %74 = vmatpush.msra.mxu0 0.0
  %75 = vmatpush.msra.mxu0 0.0
  %76 = vmatpush.msra.mxu0 0.0
  %77 = vmatpush.msra.mxu0 0.0
  %78 = vmatpush.msra.mxu0 0.0
  %79 = vmatpush.msra.mxu0 0.0
  %80 = vmatpush.msra.mxu0 0.0
  %81 = vmatpush.msra.mxu0 0.0
  %82 = vmatpush.msra.mxu0 0.0
  %83 = vmatpush.msra.mxu0 0.0
  %84 = vmatpush.msra.mxu0 %v67
  %85 = vmatmul.f32.gmra.mxu0 %v64
  %v86 = vpop.f32.mrf.mxu0
  %v87 = vadd.f32 %v61, %v86
  %88 = vdwg.mxu0
  %v89 = vadd.f32 %v55, %v87
  %v90 = vmul.f32 %v89, 0.5
  %v91 = vxor.u32 %v90, 2147483648
  %v92 = vmul.f32 %v91, 1.442695
  %v93 = vpow.pop %v92
  %v94 = vadd.f32 %v93, 1.0
  %v95 = vrcp.pop %v94
  %v96 = vmul.f32 %v94, %v95
  %v97 = vsub.f32 1.0, %v96
  %v98 = vmul.f32 %v95, %v97
  %v99 = vadd.f32 %v95, %v98
  %vm100 = vweird.f32 %v94
  %vm101 = vweird.f32 %v95
  %vm102 = vmor %vm100, %vm101
  %v103 = vsel %vm102, %v95, %v99
  %v104 = vand.u32 2147483647, %v94
  %vm105 = vcmp.eq.f32.partialorder %v104, 8.507059e+37
  %v106 = vand.u32 %v94, 2147483648
  %v107 = vor.u32 1.1754944e-38, %v106
  %v108 = vsel %vm105, %v107, %v103
  %v109 = vmul.f32 1.0, %v108
  %vm110 = vcmask 25600
  %111 = vst.msk [vmem:[%s6] sm:$0x3] %vm110, %v109
  // Predicated region
  $region26: #{cca_forward.6} parent=0 // pred_check
    _
  $region27: #{cca_forward.6} parent=0 // pred_check_branch
    %113 = sbr.rel (0) target = $region29
  $region28: #{cca_forward.6} parent=0 // pred_region
    _
  $region29: #{cca_forward.6} parent=0 // pred_fallthru
    _
  // Predicated region
  $region30: #{cca_forward.6} parent=0 // pred_check
    _
  $region31: #{cca_forward.6} parent=0 // pred_check_branch
    %115 = sbr.rel (0) target = $region33
  $region32: #{cca_forward.6} parent=0 // pred_region
    _
  $region33: #{cca_forward.6} parent=0 // pred_fallthru
    _

</llo_original>
